<compile_context>
chip_gen: v7x
topology: tpu7x:2x2x1
jax: 0.10.0
libtpu: 0.0.40
codegen_flags: <defaults>
</compile_context>

<pallas_src>
import functools
import math

import jax
import jax.numpy as jnp
from jax.experimental import pallas as pl
from jax.experimental.pallas import tpu as pltpu


# --------------------------------------------------------------------------- slab layout
def _slab_layout(hidden, batch, window):
    """Row offsets (all 8-aligned) of each piece inside the packed (rows, 128) slab."""
    H, B, W = hidden, batch, window
    off = dict(
        w_qkv=0,                    # (V, 3H)   folded BN+emb+in_proj weight
        b_qkv=8,                    # (1, 3H)   folded bias
        b_gates=16,                 # (1, 4H)   folded out_proj/LSTM bias
        b_fc=24,                    # (1, 128)  fc bias, lane-padded
        w_gates=32,                 # (H, 4H)   folded out_proj @ W_ih
        w_hh=32 + H,                # (H, 4H)   LSTM recurrent weight
        w_fc=32 + 2 * H,            # (H, 128)  fc weight, lane-padded
        seg=32 + 3 * H,             # (B*H, B*H) per-(seq,head) block-diag, 1/sqrt(d) folded
        perm=32 + 3 * H + B * H,    # (B*W, B*W) batch-major -> time-major row permutation
    )
    rows = off["perm"] + ((B * W + 7) // 8) * 8
    return off, rows


# --------------------------------------------------------------------------- fused kernel
def fused_forward_kernel(x_ref, slab_ref, o_ref, *, batch, window, hidden):
    B, W, H = batch, window, hidden
    assert B == 2  # softmax-over-2 == sigmoid specialisation
    V = x_ref.shape[1]
    H2, H3, H4 = 2 * H, 3 * H, 4 * H
    off, _ = _slab_layout(H, B, W)
    f32, bf16 = jnp.float32, jnp.bfloat16

    # ---- carve the packed bf16 weight slab (static, tile-aligned views) -----------------
    w_qkv = slab_ref[off["w_qkv"]:off["w_qkv"] + V, 0:H3].astype(f32)      # (V, 3H)
    b_qkv = slab_ref[off["b_qkv"]:off["b_qkv"] + 1, 0:H3].astype(f32)      # (1, 3H)
    b_gates = slab_ref[off["b_gates"]:off["b_gates"] + 1, 0:H4].astype(f32)
    b_fc = slab_ref[off["b_fc"]:off["b_fc"] + 1, :].astype(f32)            # (1, 128)
    w_gates = slab_ref[off["w_gates"]:off["w_gates"] + H, 0:H4]            # bf16 (H, 4H)
    w_hh = slab_ref[off["w_hh"]:off["w_hh"] + H, 0:H4]                     # bf16 (H, 4H)
    w_fc = slab_ref[off["w_fc"]:off["w_fc"] + H, :]                        # bf16 (H, 128)
    seg = slab_ref[off["seg"]:off["seg"] + B * H, 0:B * H]                 # bf16 (2H, 2H)
    perm = slab_ref[off["perm"]:off["perm"] + B * W, 0:B * W]              # bf16 (2W, 2W)

    # ---- folded BN + embedding + attention in_proj (kept f32 for input fidelity) --------
    x = x_ref[...]                                                         # (B*W, V), row b*W+t
    qkv = jnp.dot(x, w_qkv, preferred_element_type=f32) + b_qkv            # (B*W, 3H)

    # seq-len = B = 2: per-seq-position (W, H) slabs over the attention batch axis (w)
    q0, q1 = qkv[0:W, 0:H], qkv[W:2 * W, 0:H]
    k0, k1 = qkv[0:W, H:H2], qkv[W:2 * W, H:H2]
    v0, v1 = qkv[0:W, H2:H3], qkv[W:2 * W, H2:H3]

    # ---- attention: softmax over 2 keys == sigmoid of per-head score differences --------
    kd = k0 - k1
    prod = jnp.concatenate([q0 * kd, q1 * kd], axis=1).astype(bf16)        # (W, 2H) lane-dense
    diff = jnp.dot(prod, seg, preferred_element_type=f32)                  # (W, 2H): (s0-s1)/sqrt(d)
    p = jax.nn.sigmoid(diff)                    # P(attend to key 0), broadcast across head lanes
    vdelta = v0 - v1
    ctx0 = v1 + p[:, 0:H] * vdelta                                         # (W, H)
    ctx1 = v1 + p[:, H:H2] * vdelta

    # ---- folded out_proj + LSTM input projection, produced TIME-MAJOR -------------------
    ctx_bm = jnp.concatenate([ctx0, ctx1], axis=0).astype(bf16)            # (B*W, H), row b*W+t
    ctx_tm = jnp.dot(perm, ctx_bm, preferred_element_type=f32).astype(bf16)  # row t*B+b
    gx = jnp.dot(ctx_tm, w_gates, preferred_element_type=f32) + b_gates    # (B*W, 4H)

    # ---- LSTM recurrence (PyTorch gate order i, f, g, o) --------------------------------
    h = jnp.zeros((B, H), f32)
    c = jnp.zeros((B, H), f32)
    for t in range(W):
        gx_t = gx[t * B:(t + 1) * B, :]                                    # contiguous (B, 4H)
        gates = gx_t + jnp.dot(h.astype(bf16), w_hh, preferred_element_type=f32)
        s = jax.nn.sigmoid(gates)                                          # one full-width call
        g = jnp.tanh(gates[:, H2:H3])
        c = s[:, H:H2] * c + s[:, 0:H] * g
        h = s[:, H3:H4] * jnp.tanh(c)

    # ---- fc + tanh, lane-dense (128-wide, zero-padded) output store ---------------------
    out = jnp.tanh(jnp.dot(h.astype(bf16), w_fc, preferred_element_type=f32) + b_fc)
    o_ref[...] = out.astype(o_ref.dtype)


# --------------------------------------------------------------------------- wrapper
def multihead_attention_forward(x, slab, *, hidden, n_out):
    B, W, V = x.shape
    H = hidden
    assert B == 2, "kernel specialises seq-len (= torch batch) 2: softmax -> sigmoid"
    assert H % 8 == 0 and 4 * H <= 128 and V <= 8 and n_out <= 128
    # Note: for a multi-example serving workload, add a leading "parallel" grid axis over
    # example blocks to use both TensorCores on v7x; a single example stays grid-less.
    kern = functools.partial(fused_forward_kernel, batch=B, window=W, hidden=H)
    vspec = pl.BlockSpec(memory_space=pltpu.MemorySpace.VMEM)
    out_pad = pl.pallas_call(
        kern,
        out_shape=jax.ShapeDtypeStruct((B, 128), jnp.float32),
        in_specs=[vspec, vspec],
        out_specs=vspec,
    )(x.reshape(B * W, V), slab)
    return out_pad[:, :n_out]


# --------------------------------------------------------------------------- params
def init_params(key, num_variables, hidden, nhead, num_outputs):
    V, H = num_variables, hidden
    ks = jax.random.split(key, 14)

    def nrm(k, shape, s=0.1):
        return s * jax.random.normal(k, shape, jnp.float32)

    eps = 1e-5
    gamma = 1.0 + nrm(ks[0], (V,))
    beta = nrm(ks[1], (V,))
    run_mean = nrm(ks[2], (V,))
    run_var = 1.0 + 0.5 * jax.random.uniform(ks[3], (V,), jnp.float32)
    inv_std = 1.0 / jnp.sqrt(run_var + eps)

    return dict(
        bn_scale=(gamma * inv_std).reshape(1, V),
        bn_shift=(beta - run_mean * gamma * inv_std).reshape(1, V),
        w_emb=nrm(ks[4], (V, H)), b_emb=nrm(ks[5], (1, H)),
        w_in_proj=nrm(ks[6], (H, 3 * H)), b_in_proj=nrm(ks[7], (1, 3 * H)),
        w_out_proj=nrm(ks[8], (H, H)), b_out_proj=nrm(ks[9], (1, H)),
        w_ih=nrm(ks[10], (H, 4 * H)), w_hh=nrm(ks[11], (H, 4 * H)),
        b_lstm=nrm(ks[12], (1, 4 * H)),
        w_fc=nrm(ks[13], (H, num_outputs)),
        b_fc=jnp.zeros((1, num_outputs), jnp.float32),
    )


def fold_params(p, *, nhead, batch, window):
    """Host-side algebraic folding + packing of everything into ONE bf16 (rows, 128) slab."""
    V, H = p["w_emb"].shape
    assert H % nhead == 0
    d = H // nhead
    n_out = p["w_fc"].shape[1]
    B, W = batch, window

    # BN(eval affine) + embedding + attention in_proj -> one (V, 3H) linear.
    w_ei = p["w_emb"] @ p["w_in_proj"]
    w_qkv = p["bn_scale"].reshape(V, 1) * w_ei
    b_qkv = (p["bn_shift"].reshape(1, V) @ w_ei
             + p["b_emb"] @ p["w_in_proj"] + p["b_in_proj"])
    # attention out_proj + LSTM input projection -> one (H, 4H) linear.
    w_gates = p["w_out_proj"] @ p["w_ih"]
    b_gates = p["b_out_proj"] @ p["w_ih"] + p["b_lstm"]

    # Block-diagonal per-(seq-pos, head) segment-sum matrix with 1/sqrt(d) folded in.
    lane = jnp.arange(B * H) // d
    seg = (lane[:, None] == lane[None, :]).astype(jnp.float32) / math.sqrt(d)
    # Batch-major (row b*W+t) -> time-major (row t*B+b) permutation matrix.
    r = jnp.arange(B * W)
    src = (r % B) * W + r // B
    perm = (jnp.arange(B * W)[None, :] == src[:, None]).astype(jnp.float32)

    off, rows = _slab_layout(H, B, W)
    slab = jnp.zeros((rows, 128), jnp.float32)
    slab = slab.at[off["w_qkv"]:off["w_qkv"] + V, 0:3 * H].set(w_qkv)
    slab = slab.at[off["b_qkv"], 0:3 * H].set(b_qkv.reshape(-1))
    slab = slab.at[off["b_gates"], 0:4 * H].set(b_gates.reshape(-1))
    slab = slab.at[off["b_fc"], 0:n_out].set(p["b_fc"].reshape(-1))
    slab = slab.at[off["w_gates"]:off["w_gates"] + H, 0:4 * H].set(w_gates)
    slab = slab.at[off["w_hh"]:off["w_hh"] + H, 0:4 * H].set(p["w_hh"])
    slab = slab.at[off["w_fc"]:off["w_fc"] + H, 0:n_out].set(p["w_fc"])
    slab = slab.at[off["seg"]:off["seg"] + B * H, 0:B * H].set(seg)
    slab = slab.at[off["perm"]:off["perm"] + B * W, 0:B * W].set(perm)
    return slab.astype(jnp.bfloat16)


# --------------------------------------------------------------------------- reference
def reference_forward(x, params, *, nhead):
    """Pure-JAX f32 reference reproducing the PyTorch forward (eval mode)."""
    B, W, V = x.shape
    H = params["w_emb"].shape[1]
    d = H // nhead
    xn = x * params["bn_scale"].reshape(1, 1, V) + params["bn_shift"].reshape(1, 1, V)
    emb = xn @ params["w_emb"] + params["b_emb"]                        # (B, W, H)
    qkv = emb @ params["w_in_proj"] + params["b_in_proj"]
    q, k, v = jnp.split(qkv, 3, axis=-1)

    def split_heads(t):
        return t.reshape(B, W, nhead, d).transpose(1, 2, 0, 3).reshape(W * nhead, B, d)

    qh, kh, vh = split_heads(q), split_heads(k), split_heads(v)
    s = jnp.einsum("gld,gmd->glm", qh, kh) / math.sqrt(d)
    p = jax.nn.softmax(s, axis=-1)
    o = jnp.einsum("glm,gmd->gld", p, vh)
    o = o.reshape(W, nhead, B, d).transpose(2, 0, 1, 3).reshape(B, W, H)
    attn = (o.reshape(B * W, H) @ params["w_out_proj"]
            + params["b_out_proj"]).reshape(B, W, H)

    h = jnp.zeros((B, H), jnp.float32)
    c = jnp.zeros((B, H), jnp.float32)
    for t in range(W):
        gates = attn[:, t, :] @ params["w_ih"] + h @ params["w_hh"] + params["b_lstm"]
        i_g = jax.nn.sigmoid(gates[:, :H])
        f_g = jax.nn.sigmoid(gates[:, H:2 * H])
        g_g = jnp.tanh(gates[:, 2 * H:3 * H])
        o_g = jax.nn.sigmoid(gates[:, 3 * H:])
        c = f_g * c + i_g * g_g
        h = o_g * jnp.tanh(c)
    return jnp.tanh(h @ params["w_fc"] + params["b_fc"])


# --------------------------------------------------------------------------- main
if __name__ == "__main__":
    WINDOW, NVARS, NOUT = 8, 4, 3      # window_size, num_variables, num_outputs
    HIDDEN, NHEAD = 32, 4              # hidden_size, nhead (hidden % nhead == 0)
    BATCH = 2

    root = jax.random.PRNGKey(0)
    k_params, k_x = jax.random.split(root)
    params = init_params(k_params, NVARS, HIDDEN, NHEAD, NOUT)
    slab = fold_params(params, nhead=NHEAD, batch=BATCH, window=WINDOW)
    x = jax.random.normal(k_x, (BATCH, WINDOW, NVARS), jnp.float32)

    fwd = jax.jit(functools.partial(multihead_attention_forward,
                                    hidden=HIDDEN, n_out=NOUT))
    out = jax.block_until_ready(fwd(x, slab))

    ref = reference_forward(x, params, nhead=NHEAD)
    assert out.shape == (BATCH, NOUT), out.shape
    assert bool(jnp.all(jnp.isfinite(out)))
    err = float(jnp.max(jnp.abs(out - ref)))
    # bf16 MXU operands (weights stored bf16) -> expected ~1e-3 deviation from f32 reference.
    assert err < 2e-2, f"max abs error {err}"
    print("KERNEL_OK")
</pallas_src>

<mosaic_0001>
module attributes {stable_mosaic.version = 11 : i64} {
  func.func @fused_forward_kernel(%arg0: memref<16x4xf32, #tpu.memory_space<vmem>>, %arg1: memref<208x128xbf16, #tpu.memory_space<vmem>>, %arg2: memref<2x128xf32, #tpu.memory_space<vmem>>) attributes {dimension_semantics = [], scalar_prefetch = 0 : i64, scratch_operands = 0 : i64, tpu.core_type = #tpu.core_type<tc>} {
    %c0 = arith.constant 0 : index
    %c0_0 = arith.constant 0 : index
    %0 = vector.load %arg1[%c0, %c0_0] : memref<208x128xbf16, #tpu.memory_space<vmem>>, vector<4x96xbf16>
    %1 = arith.extf %0 : vector<4x96xbf16> to vector<4x96xf32>
    %c8 = arith.constant 8 : index
    %c0_1 = arith.constant 0 : index
    %2 = vector.load %arg1[%c8, %c0_1] : memref<208x128xbf16, #tpu.memory_space<vmem>>, vector<1x96xbf16>
    %3 = arith.extf %2 : vector<1x96xbf16> to vector<1x96xf32>
    %c16 = arith.constant 16 : index
    %c0_2 = arith.constant 0 : index
    %4 = vector.load %arg1[%c16, %c0_2] : memref<208x128xbf16, #tpu.memory_space<vmem>>, vector<1x128xbf16>
    %5 = arith.extf %4 : vector<1x128xbf16> to vector<1x128xf32>
    %c24 = arith.constant 24 : index
    %c0_3 = arith.constant 0 : index
    %6 = vector.load %arg1[%c24, %c0_3] : memref<208x128xbf16, #tpu.memory_space<vmem>>, vector<1x128xbf16>
    %7 = arith.extf %6 : vector<1x128xbf16> to vector<1x128xf32>
    %c32 = arith.constant 32 : index
    %c0_4 = arith.constant 0 : index
    %8 = vector.load %arg1[%c32, %c0_4] : memref<208x128xbf16, #tpu.memory_space<vmem>>, vector<32x128xbf16>
    %c64 = arith.constant 64 : index
    %c0_5 = arith.constant 0 : index
    %9 = vector.load %arg1[%c64, %c0_5] : memref<208x128xbf16, #tpu.memory_space<vmem>>, vector<32x128xbf16>
    %c96 = arith.constant 96 : index
    %c0_6 = arith.constant 0 : index
    %10 = vector.load %arg1[%c96, %c0_6] : memref<208x128xbf16, #tpu.memory_space<vmem>>, vector<32x128xbf16>
    %c128 = arith.constant 128 : index
    %c0_7 = arith.constant 0 : index
    %11 = vector.load %arg1[%c128, %c0_7] : memref<208x128xbf16, #tpu.memory_space<vmem>>, vector<64x64xbf16>
    %c192 = arith.constant 192 : index
    %c0_8 = arith.constant 0 : index
    %12 = vector.load %arg1[%c192, %c0_8] : memref<208x128xbf16, #tpu.memory_space<vmem>>, vector<16x16xbf16>
    %c0_9 = arith.constant 0 : index
    %c0_10 = arith.constant 0 : index
    %13 = vector.load %arg0[%c0_9, %c0_10] : memref<16x4xf32, #tpu.memory_space<vmem>>, vector<16x4xf32>
    %cst = arith.constant dense<0.000000e+00> : vector<16x96xf32>
    %14 = tpu.matmul %13, %1, %cst {dimension_numbers = #tpu.dot_dimension_numbers<[1], [0], [0], [1], [0, 0, 1, 1], [], []>} : vector<16x4xf32>, vector<4x96xf32>, vector<16x96xf32> -> vector<16x96xf32>
    %15 = vector.broadcast %3 : vector<1x96xf32> to vector<16x96xf32>
    %16 = arith.addf %14, %15 : vector<16x96xf32>
    %17 = vector.extract_strided_slice %16 {offsets = [0, 0], sizes = [8, 32], strides = [1, 1]} : vector<16x96xf32> to vector<8x32xf32>
    %18 = vector.extract_strided_slice %16 {offsets = [8, 0], sizes = [8, 32], strides = [1, 1]} : vector<16x96xf32> to vector<8x32xf32>
    %19 = vector.extract_strided_slice %16 {offsets = [0, 32], sizes = [8, 32], strides = [1, 1]} : vector<16x96xf32> to vector<8x32xf32>
    %20 = vector.extract_strided_slice %16 {offsets = [8, 32], sizes = [8, 32], strides = [1, 1]} : vector<16x96xf32> to vector<8x32xf32>
    %21 = vector.extract_strided_slice %16 {offsets = [0, 64], sizes = [8, 32], strides = [1, 1]} : vector<16x96xf32> to vector<8x32xf32>
    %22 = vector.extract_strided_slice %16 {offsets = [8, 64], sizes = [8, 32], strides = [1, 1]} : vector<16x96xf32> to vector<8x32xf32>
    %23 = arith.subf %19, %20 : vector<8x32xf32>
    %24 = arith.mulf %17, %23 : vector<8x32xf32>
    %25 = arith.mulf %18, %23 : vector<8x32xf32>
    %26 = tpu.concatenate %24, %25 in 1 : vector<8x32xf32>, vector<8x32xf32> -> vector<8x64xf32>
    %27 = arith.truncf %26 : vector<8x64xf32> to vector<8x64xbf16>
    %cst_11 = arith.constant dense<0.000000e+00> : vector<8x64xf32>
    %28 = tpu.matmul %27, %11, %cst_11 {dimension_numbers = #tpu.dot_dimension_numbers<[1], [0], [0], [1], [0, 0, 1, 1], [], []>} : vector<8x64xbf16>, vector<64x64xbf16>, vector<8x64xf32> -> vector<8x64xf32>
    %29 = arith.negf %28 : vector<8x64xf32>
    %30 = math.exp %29 : vector<8x64xf32>
    %cst_12 = arith.constant 1.000000e+00 : f32
    %31 = vector.broadcast %cst_12 : f32 to vector<8x64xf32>
    %32 = arith.addf %31, %30 : vector<8x64xf32>
    %33 = arith.divf %31, %32 : vector<8x64xf32>
    %34 = arith.subf %21, %22 : vector<8x32xf32>
    %35 = vector.extract_strided_slice %33 {offsets = [0, 0], sizes = [8, 32], strides = [1, 1]} : vector<8x64xf32> to vector<8x32xf32>
    %36 = arith.mulf %35, %34 : vector<8x32xf32>
    %37 = arith.addf %22, %36 : vector<8x32xf32>
    %38 = vector.extract_strided_slice %33 {offsets = [0, 32], sizes = [8, 32], strides = [1, 1]} : vector<8x64xf32> to vector<8x32xf32>
    %39 = arith.mulf %38, %34 : vector<8x32xf32>
    %40 = arith.addf %22, %39 : vector<8x32xf32>
    %41 = tpu.concatenate %37, %40 in 0 : vector<8x32xf32>, vector<8x32xf32> -> vector<16x32xf32>
    %42 = arith.truncf %41 : vector<16x32xf32> to vector<16x32xbf16>
    %cst_13 = arith.constant dense<0.000000e+00> : vector<16x32xf32>
    %43 = tpu.matmul %12, %42, %cst_13 {dimension_numbers = #tpu.dot_dimension_numbers<[1], [0], [0], [1], [0, 0, 1, 1], [], []>} : vector<16x16xbf16>, vector<16x32xbf16>, vector<16x32xf32> -> vector<16x32xf32>
    %44 = arith.truncf %43 : vector<16x32xf32> to vector<16x32xbf16>
    %cst_14 = arith.constant dense<0.000000e+00> : vector<16x128xf32>
    %45 = tpu.matmul %44, %8, %cst_14 {dimension_numbers = #tpu.dot_dimension_numbers<[1], [0], [0], [1], [0, 0, 1, 1], [], []>} : vector<16x32xbf16>, vector<32x128xbf16>, vector<16x128xf32> -> vector<16x128xf32>
    %46 = vector.broadcast %5 : vector<1x128xf32> to vector<16x128xf32>
    %47 = arith.addf %45, %46 : vector<16x128xf32>
    %cst_15 = arith.constant 0.000000e+00 : f32
    %48 = vector.broadcast %cst_15 : f32 to vector<2x32xf32>
    %cst_16 = arith.constant 0.000000e+00 : f32
    %49 = vector.broadcast %cst_16 : f32 to vector<2x32xf32>
    %50 = vector.extract_strided_slice %47 {offsets = [0, 0], sizes = [2, 128], strides = [1, 1]} : vector<16x128xf32> to vector<2x128xf32>
    %51 = arith.truncf %48 : vector<2x32xf32> to vector<2x32xbf16>
    %cst_17 = arith.constant dense<0.000000e+00> : vector<2x128xf32>
    %52 = tpu.matmul %51, %9, %cst_17 {dimension_numbers = #tpu.dot_dimension_numbers<[1], [0], [0], [1], [0, 0, 1, 1], [], []>} : vector<2x32xbf16>, vector<32x128xbf16>, vector<2x128xf32> -> vector<2x128xf32>
    %53 = arith.addf %50, %52 : vector<2x128xf32>
    %54 = arith.negf %53 : vector<2x128xf32>
    %55 = math.exp %54 : vector<2x128xf32>
    %cst_18 = arith.constant 1.000000e+00 : f32
    %56 = vector.broadcast %cst_18 : f32 to vector<2x128xf32>
    %57 = arith.addf %56, %55 : vector<2x128xf32>
    %58 = arith.divf %56, %57 : vector<2x128xf32>
    %59 = vector.extract_strided_slice %53 {offsets = [0, 64], sizes = [2, 32], strides = [1, 1]} : vector<2x128xf32> to vector<2x32xf32>
    %60 = math.tanh %59 : vector<2x32xf32>
    %61 = vector.extract_strided_slice %58 {offsets = [0, 32], sizes = [2, 32], strides = [1, 1]} : vector<2x128xf32> to vector<2x32xf32>
    %62 = arith.mulf %61, %49 : vector<2x32xf32>
    %63 = vector.extract_strided_slice %58 {offsets = [0, 0], sizes = [2, 32], strides = [1, 1]} : vector<2x128xf32> to vector<2x32xf32>
    %64 = arith.mulf %63, %60 : vector<2x32xf32>
    %65 = arith.addf %62, %64 : vector<2x32xf32>
    %66 = vector.extract_strided_slice %58 {offsets = [0, 96], sizes = [2, 32], strides = [1, 1]} : vector<2x128xf32> to vector<2x32xf32>
    %67 = math.tanh %65 : vector<2x32xf32>
    %68 = arith.mulf %66, %67 : vector<2x32xf32>
    %69 = vector.extract_strided_slice %47 {offsets = [2, 0], sizes = [2, 128], strides = [1, 1]} : vector<16x128xf32> to vector<2x128xf32>
    %70 = arith.truncf %68 : vector<2x32xf32> to vector<2x32xbf16>
    %cst_19 = arith.constant dense<0.000000e+00> : vector<2x128xf32>
    %71 = tpu.matmul %70, %9, %cst_19 {dimension_numbers = #tpu.dot_dimension_numbers<[1], [0], [0], [1], [0, 0, 1, 1], [], []>} : vector<2x32xbf16>, vector<32x128xbf16>, vector<2x128xf32> -> vector<2x128xf32>
    %72 = arith.addf %69, %71 : vector<2x128xf32>
    %73 = arith.negf %72 : vector<2x128xf32>
    %74 = math.exp %73 : vector<2x128xf32>
    %cst_20 = arith.constant 1.000000e+00 : f32
    %75 = vector.broadcast %cst_20 : f32 to vector<2x128xf32>
    %76 = arith.addf %75, %74 : vector<2x128xf32>
    %77 = arith.divf %75, %76 : vector<2x128xf32>
    %78 = vector.extract_strided_slice %72 {offsets = [0, 64], sizes = [2, 32], strides = [1, 1]} : vector<2x128xf32> to vector<2x32xf32>
    %79 = math.tanh %78 : vector<2x32xf32>
    %80 = vector.extract_strided_slice %77 {offsets = [0, 32], sizes = [2, 32], strides = [1, 1]} : vector<2x128xf32> to vector<2x32xf32>
    %81 = arith.mulf %80, %65 : vector<2x32xf32>
    %82 = vector.extract_strided_slice %77 {offsets = [0, 0], sizes = [2, 32], strides = [1, 1]} : vector<2x128xf32> to vector<2x32xf32>
    %83 = arith.mulf %82, %79 : vector<2x32xf32>
    %84 = arith.addf %81, %83 : vector<2x32xf32>
    %85 = vector.extract_strided_slice %77 {offsets = [0, 96], sizes = [2, 32], strides = [1, 1]} : vector<2x128xf32> to vector<2x32xf32>
    %86 = math.tanh %84 : vector<2x32xf32>
    %87 = arith.mulf %85, %86 : vector<2x32xf32>
    %88 = vector.extract_strided_slice %47 {offsets = [4, 0], sizes = [2, 128], strides = [1, 1]} : vector<16x128xf32> to vector<2x128xf32>
    %89 = arith.truncf %87 : vector<2x32xf32> to vector<2x32xbf16>
    %cst_21 = arith.constant dense<0.000000e+00> : vector<2x128xf32>
    %90 = tpu.matmul %89, %9, %cst_21 {dimension_numbers = #tpu.dot_dimension_numbers<[1], [0], [0], [1], [0, 0, 1, 1], [], []>} : vector<2x32xbf16>, vector<32x128xbf16>, vector<2x128xf32> -> vector<2x128xf32>
    %91 = arith.addf %88, %90 : vector<2x128xf32>
    %92 = arith.negf %91 : vector<2x128xf32>
    %93 = math.exp %92 : vector<2x128xf32>
    %cst_22 = arith.constant 1.000000e+00 : f32
    %94 = vector.broadcast %cst_22 : f32 to vector<2x128xf32>
    %95 = arith.addf %94, %93 : vector<2x128xf32>
    %96 = arith.divf %94, %95 : vector<2x128xf32>
    %97 = vector.extract_strided_slice %91 {offsets = [0, 64], sizes = [2, 32], strides = [1, 1]} : vector<2x128xf32> to vector<2x32xf32>
    %98 = math.tanh %97 : vector<2x32xf32>
    %99 = vector.extract_strided_slice %96 {offsets = [0, 32], sizes = [2, 32], strides = [1, 1]} : vector<2x128xf32> to vector<2x32xf32>
    %100 = arith.mulf %99, %84 : vector<2x32xf32>
    %101 = vector.extract_strided_slice %96 {offsets = [0, 0], sizes = [2, 32], strides = [1, 1]} : vector<2x128xf32> to vector<2x32xf32>
    %102 = arith.mulf %101, %98 : vector<2x32xf32>
    %103 = arith.addf %100, %102 : vector<2x32xf32>
    %104 = vector.extract_strided_slice %96 {offsets = [0, 96], sizes = [2, 32], strides = [1, 1]} : vector<2x128xf32> to vector<2x32xf32>
    %105 = math.tanh %103 : vector<2x32xf32>
    %106 = arith.mulf %104, %105 : vector<2x32xf32>
    %107 = vector.extract_strided_slice %47 {offsets = [6, 0], sizes = [2, 128], strides = [1, 1]} : vector<16x128xf32> to vector<2x128xf32>
    %108 = arith.truncf %106 : vector<2x32xf32> to vector<2x32xbf16>
    %cst_23 = arith.constant dense<0.000000e+00> : vector<2x128xf32>
    %109 = tpu.matmul %108, %9, %cst_23 {dimension_numbers = #tpu.dot_dimension_numbers<[1], [0], [0], [1], [0, 0, 1, 1], [], []>} : vector<2x32xbf16>, vector<32x128xbf16>, vector<2x128xf32> -> vector<2x128xf32>
    %110 = arith.addf %107, %109 : vector<2x128xf32>
    %111 = arith.negf %110 : vector<2x128xf32>
    %112 = math.exp %111 : vector<2x128xf32>
    %cst_24 = arith.constant 1.000000e+00 : f32
    %113 = vector.broadcast %cst_24 : f32 to vector<2x128xf32>
    %114 = arith.addf %113, %112 : vector<2x128xf32>
    %115 = arith.divf %113, %114 : vector<2x128xf32>
    %116 = vector.extract_strided_slice %110 {offsets = [0, 64], sizes = [2, 32], strides = [1, 1]} : vector<2x128xf32> to vector<2x32xf32>
    %117 = math.tanh %116 : vector<2x32xf32>
    %118 = vector.extract_strided_slice %115 {offsets = [0, 32], sizes = [2, 32], strides = [1, 1]} : vector<2x128xf32> to vector<2x32xf32>
    %119 = arith.mulf %118, %103 : vector<2x32xf32>
    %120 = vector.extract_strided_slice %115 {offsets = [0, 0], sizes = [2, 32], strides = [1, 1]} : vector<2x128xf32> to vector<2x32xf32>
    %121 = arith.mulf %120, %117 : vector<2x32xf32>
    %122 = arith.addf %119, %121 : vector<2x32xf32>
    %123 = vector.extract_strided_slice %115 {offsets = [0, 96], sizes = [2, 32], strides = [1, 1]} : vector<2x128xf32> to vector<2x32xf32>
    %124 = math.tanh %122 : vector<2x32xf32>
    %125 = arith.mulf %123, %124 : vector<2x32xf32>
    %126 = vector.extract_strided_slice %47 {offsets = [8, 0], sizes = [2, 128], strides = [1, 1]} : vector<16x128xf32> to vector<2x128xf32>
    %127 = arith.truncf %125 : vector<2x32xf32> to vector<2x32xbf16>
    %cst_25 = arith.constant dense<0.000000e+00> : vector<2x128xf32>
    %128 = tpu.matmul %127, %9, %cst_25 {dimension_numbers = #tpu.dot_dimension_numbers<[1], [0], [0], [1], [0, 0, 1, 1], [], []>} : vector<2x32xbf16>, vector<32x128xbf16>, vector<2x128xf32> -> vector<2x128xf32>
    %129 = arith.addf %126, %128 : vector<2x128xf32>
    %130 = arith.negf %129 : vector<2x128xf32>
    %131 = math.exp %130 : vector<2x128xf32>
    %cst_26 = arith.constant 1.000000e+00 : f32
    %132 = vector.broadcast %cst_26 : f32 to vector<2x128xf32>
    %133 = arith.addf %132, %131 : vector<2x128xf32>
    %134 = arith.divf %132, %133 : vector<2x128xf32>
    %135 = vector.extract_strided_slice %129 {offsets = [0, 64], sizes = [2, 32], strides = [1, 1]} : vector<2x128xf32> to vector<2x32xf32>
    %136 = math.tanh %135 : vector<2x32xf32>
    %137 = vector.extract_strided_slice %134 {offsets = [0, 32], sizes = [2, 32], strides = [1, 1]} : vector<2x128xf32> to vector<2x32xf32>
    %138 = arith.mulf %137, %122 : vector<2x32xf32>
    %139 = vector.extract_strided_slice %134 {offsets = [0, 0], sizes = [2, 32], strides = [1, 1]} : vector<2x128xf32> to vector<2x32xf32>
    %140 = arith.mulf %139, %136 : vector<2x32xf32>
    %141 = arith.addf %138, %140 : vector<2x32xf32>
    %142 = vector.extract_strided_slice %134 {offsets = [0, 96], sizes = [2, 32], strides = [1, 1]} : vector<2x128xf32> to vector<2x32xf32>
    %143 = math.tanh %141 : vector<2x32xf32>
    %144 = arith.mulf %142, %143 : vector<2x32xf32>
    %145 = vector.extract_strided_slice %47 {offsets = [10, 0], sizes = [2, 128], strides = [1, 1]} : vector<16x128xf32> to vector<2x128xf32>
    %146 = arith.truncf %144 : vector<2x32xf32> to vector<2x32xbf16>
    %cst_27 = arith.constant dense<0.000000e+00> : vector<2x128xf32>
    %147 = tpu.matmul %146, %9, %cst_27 {dimension_numbers = #tpu.dot_dimension_numbers<[1], [0], [0], [1], [0, 0, 1, 1], [], []>} : vector<2x32xbf16>, vector<32x128xbf16>, vector<2x128xf32> -> vector<2x128xf32>
    %148 = arith.addf %145, %147 : vector<2x128xf32>
    %149 = arith.negf %148 : vector<2x128xf32>
    %150 = math.exp %149 : vector<2x128xf32>
    %cst_28 = arith.constant 1.000000e+00 : f32
    %151 = vector.broadcast %cst_28 : f32 to vector<2x128xf32>
    %152 = arith.addf %151, %150 : vector<2x128xf32>
    %153 = arith.divf %151, %152 : vector<2x128xf32>
    %154 = vector.extract_strided_slice %148 {offsets = [0, 64], sizes = [2, 32], strides = [1, 1]} : vector<2x128xf32> to vector<2x32xf32>
    %155 = math.tanh %154 : vector<2x32xf32>
    %156 = vector.extract_strided_slice %153 {offsets = [0, 32], sizes = [2, 32], strides = [1, 1]} : vector<2x128xf32> to vector<2x32xf32>
    %157 = arith.mulf %156, %141 : vector<2x32xf32>
    %158 = vector.extract_strided_slice %153 {offsets = [0, 0], sizes = [2, 32], strides = [1, 1]} : vector<2x128xf32> to vector<2x32xf32>
    %159 = arith.mulf %158, %155 : vector<2x32xf32>
    %160 = arith.addf %157, %159 : vector<2x32xf32>
    %161 = vector.extract_strided_slice %153 {offsets = [0, 96], sizes = [2, 32], strides = [1, 1]} : vector<2x128xf32> to vector<2x32xf32>
    %162 = math.tanh %160 : vector<2x32xf32>
    %163 = arith.mulf %161, %162 : vector<2x32xf32>
    %164 = vector.extract_strided_slice %47 {offsets = [12, 0], sizes = [2, 128], strides = [1, 1]} : vector<16x128xf32> to vector<2x128xf32>
    %165 = arith.truncf %163 : vector<2x32xf32> to vector<2x32xbf16>
    %cst_29 = arith.constant dense<0.000000e+00> : vector<2x128xf32>
    %166 = tpu.matmul %165, %9, %cst_29 {dimension_numbers = #tpu.dot_dimension_numbers<[1], [0], [0], [1], [0, 0, 1, 1], [], []>} : vector<2x32xbf16>, vector<32x128xbf16>, vector<2x128xf32> -> vector<2x128xf32>
    %167 = arith.addf %164, %166 : vector<2x128xf32>
    %168 = arith.negf %167 : vector<2x128xf32>
    %169 = math.exp %168 : vector<2x128xf32>
    %cst_30 = arith.constant 1.000000e+00 : f32
    %170 = vector.broadcast %cst_30 : f32 to vector<2x128xf32>
    %171 = arith.addf %170, %169 : vector<2x128xf32>
    %172 = arith.divf %170, %171 : vector<2x128xf32>
    %173 = vector.extract_strided_slice %167 {offsets = [0, 64], sizes = [2, 32], strides = [1, 1]} : vector<2x128xf32> to vector<2x32xf32>
    %174 = math.tanh %173 : vector<2x32xf32>
    %175 = vector.extract_strided_slice %172 {offsets = [0, 32], sizes = [2, 32], strides = [1, 1]} : vector<2x128xf32> to vector<2x32xf32>
    %176 = arith.mulf %175, %160 : vector<2x32xf32>
    %177 = vector.extract_strided_slice %172 {offsets = [0, 0], sizes = [2, 32], strides = [1, 1]} : vector<2x128xf32> to vector<2x32xf32>
    %178 = arith.mulf %177, %174 : vector<2x32xf32>
    %179 = arith.addf %176, %178 : vector<2x32xf32>
    %180 = vector.extract_strided_slice %172 {offsets = [0, 96], sizes = [2, 32], strides = [1, 1]} : vector<2x128xf32> to vector<2x32xf32>
    %181 = math.tanh %179 : vector<2x32xf32>
    %182 = arith.mulf %180, %181 : vector<2x32xf32>
    %183 = vector.extract_strided_slice %47 {offsets = [14, 0], sizes = [2, 128], strides = [1, 1]} : vector<16x128xf32> to vector<2x128xf32>
    %184 = arith.truncf %182 : vector<2x32xf32> to vector<2x32xbf16>
    %cst_31 = arith.constant dense<0.000000e+00> : vector<2x128xf32>
    %185 = tpu.matmul %184, %9, %cst_31 {dimension_numbers = #tpu.dot_dimension_numbers<[1], [0], [0], [1], [0, 0, 1, 1], [], []>} : vector<2x32xbf16>, vector<32x128xbf16>, vector<2x128xf32> -> vector<2x128xf32>
    %186 = arith.addf %183, %185 : vector<2x128xf32>
    %187 = arith.negf %186 : vector<2x128xf32>
    %188 = math.exp %187 : vector<2x128xf32>
    %cst_32 = arith.constant 1.000000e+00 : f32
    %189 = vector.broadcast %cst_32 : f32 to vector<2x128xf32>
    %190 = arith.addf %189, %188 : vector<2x128xf32>
    %191 = arith.divf %189, %190 : vector<2x128xf32>
    %192 = vector.extract_strided_slice %186 {offsets = [0, 64], sizes = [2, 32], strides = [1, 1]} : vector<2x128xf32> to vector<2x32xf32>
    %193 = math.tanh %192 : vector<2x32xf32>
    %194 = vector.extract_strided_slice %191 {offsets = [0, 32], sizes = [2, 32], strides = [1, 1]} : vector<2x128xf32> to vector<2x32xf32>
    %195 = arith.mulf %194, %179 : vector<2x32xf32>
    %196 = vector.extract_strided_slice %191 {offsets = [0, 0], sizes = [2, 32], strides = [1, 1]} : vector<2x128xf32> to vector<2x32xf32>
    %197 = arith.mulf %196, %193 : vector<2x32xf32>
    %198 = arith.addf %195, %197 : vector<2x32xf32>
    %199 = vector.extract_strided_slice %191 {offsets = [0, 96], sizes = [2, 32], strides = [1, 1]} : vector<2x128xf32> to vector<2x32xf32>
    %200 = math.tanh %198 : vector<2x32xf32>
    %201 = arith.mulf %199, %200 : vector<2x32xf32>
    %202 = arith.truncf %201 : vector<2x32xf32> to vector<2x32xbf16>
    %cst_33 = arith.constant dense<0.000000e+00> : vector<2x128xf32>
    %203 = tpu.matmul %202, %10, %cst_33 {dimension_numbers = #tpu.dot_dimension_numbers<[1], [0], [0], [1], [0, 0, 1, 1], [], []>} : vector<2x32xbf16>, vector<32x128xbf16>, vector<2x128xf32> -> vector<2x128xf32>
    %204 = vector.broadcast %7 : vector<1x128xf32> to vector<2x128xf32>
    %205 = arith.addf %203, %204 : vector<2x128xf32>
    %206 = math.tanh %205 : vector<2x128xf32>
    %c0_34 = arith.constant 0 : index
    %c0_35 = arith.constant 0 : index
    %207 = vector.load %arg2[%c0_34, %c0_35] : memref<2x128xf32, #tpu.memory_space<vmem>>, vector<2x128xf32>
    tpu.vector_store %arg2[%c0_34, %c0_35], %206 {strides = array<i32>} : memref<2x128xf32, #tpu.memory_space<vmem>>, vector<2x128xf32>,
    return
  }
}

</mosaic_0001>

<llo_original>
// kernel: multihead_attention_forward.1
$region0: #{multihead_attention_forward.1}
  #allocation0 [shape = 'u32[]', space=smem, size = 0x4, offset = 0x4, fixed_abs, tag = 'smem constant byte address 0x4 - core index']
  #allocation1 [shape = 'u32[144,128]{1,0:T(1,128)}', space=vmem, size = 0x12000, scoped, tag = 'internal scratch']
  %s0 = inlined_call_operand.vmem [shape: f32[16,4], index: 0, kind: input, shape index: {}]
  %s1 = inlined_call_operand.hbm [shape: bf16[208,128], index: 1, kind: input, shape index: {}]
  %s2 = inlined_call_operand.hbm [shape: f32[2,128], index: 2, kind: output, shape index: {}]
  %s3 = sld [smem:[#allocation0]]
  $region22: #{multihead_attention_forward.1} parent=0
    _
  %s5 = ssub.s32 1, %s3
  %s6 = scalar_select 0, %s5, %s3
  $region1: #{multihead_attention_forward.1} parent=0
    #allocation2 [shape = 'u8[53248]{0}', space=vmem, size = 0xd000, scoped, tag = 'input window, operand 1, single buffered']
    #allocation3 [shape = 's32[1]{0}', space=sflag, size = 0x4, scoped, tag = 'scoped memory for multihead_attention_forward.1']
    #allocation4 [shape = 's32[1]{0}', space=sflag, size = 0x4, scoped, tag = 'scoped memory for multihead_attention_forward.1']
    #allocation5 [shape = 'u8[1024]{0}', space=vmem, size = 0x400, scoped, tag = 'output window, operand 0, single buffered']
    %7 = vsyncpa [#allocation3], 0
    %8 = vsyncpa [#allocation4], 0
    // Predicated region
    $region2: #{multihead_attention_forward.1} parent=1 // pred_check
      _
    $region3: #{multihead_attention_forward.1} parent=1 // pred_check_branch
      %10 = sbr.rel (0) target = $region5
    $region4: #{multihead_attention_forward.1} parent=1 // pred_region
      _
    $region5: #{multihead_attention_forward.1} parent=1 // pred_fallthru
      _
    // Predicated region
    $region6: #{multihead_attention_forward.1} parent=1 // pred_check
      _
    $region7: #{multihead_attention_forward.1} parent=1 // pred_check_branch
      %12 = sbr.rel (0) target = $region9
    $region8: #{multihead_attention_forward.1} parent=1 // pred_region
      %s14 = ssub.s32 1664, 1664
      %15 = vsyncadd [#allocation3], %s14
      %s16 = sshll.u32 [#allocation2], 4
      %s17 = int_to_ptr.vmem [resolvable:$true] %s16
      %22 = dma.hbm_to_vmem [thread:$0]  %s1, 1664, %s17, [#allocation3], 64, 64, 4
    $region9: #{multihead_attention_forward.1} parent=1 // pred_fallthru
      _
    // Predicated region
    $region10: #{multihead_attention_forward.1} parent=1 // pred_check
      _
    $region11: #{multihead_attention_forward.1} parent=1 // pred_check_branch
      %24 = sbr.rel (0) target = $region13
    $region12: #{multihead_attention_forward.1} parent=1 // pred_region
      %25 = dma.done [#allocation3], 1664
    $region13: #{multihead_attention_forward.1} parent=1 // pred_fallthru
      _
    %v27 = vld [vmem:[#allocation2] sm:$0x3]
    %v28 = vunpack.c.l.bf16 %v27
    %v29 = vld [vmem:[#allocation2 + $0x4] sm:$0x1]
    %v30 = vunpack.c.l.bf16 %v29
    %v31 = vld [vmem:[#allocation2 + $0x8] sm:$0x1]
    %v32 = vunpack.c.l.bf16 %v31
    %v33 = vld [vmem:[#allocation2 + $0xc] sm:$0x1]
    %v34 = vunpack.c.l.bf16 %v33
    %v35 = vld [vmem:[#allocation2 + $0x10] sm:$0xf]
    %v36 = vld [vmem:[#allocation2 + $0x14] sm:$0xf]
    %v37 = vld [vmem:[#allocation2 + $0x18] sm:$0xf]
    %v38 = vld [vmem:[#allocation2 + $0x1c] sm:$0xf]
    %v39 = vld [vmem:[#allocation2 + $0x20] sm:$0xf]
    %v40 = vld [vmem:[#allocation2 + $0x24] sm:$0xf]
    %v41 = vld [vmem:[#allocation2 + $0x28] sm:$0xf]
    %v42 = vld [vmem:[#allocation2 + $0x2c] sm:$0xf]
    %v43 = vld [vmem:[#allocation2 + $0x30] sm:$0xf]
    %v44 = vld [vmem:[#allocation2 + $0x34] sm:$0xf]
    %v45 = vld [vmem:[#allocation2 + $0x38] sm:$0xf]
    %v46 = vld [vmem:[#allocation2 + $0x3c] sm:$0xf]
    %v47 = vld [vmem:[#allocation2 + $0x40] sm:$0xf]
    %v48 = vld [vmem:[#allocation2 + $0x44] sm:$0xf]
    %v49 = vld [vmem:[#allocation2 + $0x48] sm:$0xf]
    %v50 = vld [vmem:[#allocation2 + $0x4c] sm:$0xf]
    %v51 = vld [vmem:[#allocation2 + $0x50] sm:$0xf]
    %v52 = vld [vmem:[#allocation2 + $0x54] sm:$0xf]
    %v53 = vld [vmem:[#allocation2 + $0x58] sm:$0xf]
    %v54 = vld [vmem:[#allocation2 + $0x5c] sm:$0xf]
    %v55 = vld [vmem:[#allocation2 + $0x60] sm:$0xf]
    %v56 = vld [vmem:[#allocation2 + $0x64] sm:$0xf]
    %v57 = vld [vmem:[%s0] sm:$0xff]
    %v58 = vld [vmem:[%s0 + $0x8] sm:$0xff]
    %v59 = vlaneseq
    %v60 = vshrl.u32 %v59, 7
    %v61 = vsub.s32 0, %v60
    %v62 = vrot.slane %v30, %v61
    %vm63 = vcmask 31744
    %v65 = vsel %vm63, %v57, 0
    %v68 = vsel %vm63, %v58, 0
    %vm70 = vcmask 1043456
    %v72 = vsel %vm70, %v28, 0
    %74 = vmatprep.subr.mxu0 0.0
    %75 = vmatpush1.msra.mxu0 %v72
    %76 = vmatprep.subr.mxu0 0.0
    %77 = vmatpush1.msra.mxu0 0.0
    %78 = vmatprep.subr.mxu0 0.0
    %79 = vmatpush1.msra.mxu0 0.0
    %80 = vmatprep.subr.mxu0 0.0
    %81 = vmatpush1.msra.mxu0 0.0
    %82 = vmatprep.subr.mxu0 0.0
    %83 = vmatpush1.msra.mxu0 0.0
    %84 = vmatprep.subr.mxu0 0.0
    %85 = vmatpush1.msra.mxu0 0.0
    %86 = vmatprep.subr.mxu0 0.0
    %87 = vmatpush1.msra.mxu0 0.0
    %88 = vmatprep.subr.mxu0 0.0
    %89 = vmatpush1.msra.mxu0 0.0
    %90 = vmatprep.subr.mxu0 0.0
    %91 = vmatpush1.msra.mxu0 0.0
    %92 = vmatprep.subr.mxu0 0.0
    %93 = vmatpush1.msra.mxu0 0.0
    %94 = vmatprep.subr.mxu0 0.0
    %95 = vmatpush1.msra.mxu0 0.0
    %96 = vmatprep.subr.mxu0 0.0
    %97 = vmatpush1.msra.mxu0 0.0
    %98 = vmatprep.subr.mxu0 0.0
    %99 = vmatpush1.msra.mxu0 0.0
    %100 = vmatprep.subr.mxu0 0.0
    %101 = vmatpush1.msra.mxu0 0.0
    %102 = vmatprep.subr.mxu0 0.0
    %103 = vmatpush1.msra.mxu0 0.0
    %104 = vmatprep.subr.mxu0 0.0
    %105 = vmatpush1.msra.mxu0 0.0
    %106 = vmatprep.subr.mxu0 0.0
    %107 = vmatpush1.msra.mxu0 0.0
    %108 = vmatprep.subr.mxu0 0.0
    %109 = vmatpush1.msra.mxu0 0.0
    %110 = vmatprep.subr.mxu0 0.0
    %111 = vmatpush1.msra.mxu0 0.0
    %112 = vmatprep.subr.mxu0 0.0
    %113 = vmatpush1.msra.mxu0 0.0
    %114 = vmatprep.subr.mxu0 0.0
    %115 = vmatpush1.msra.mxu0 0.0
    %116 = vmatprep.subr.mxu0 0.0
    %117 = vmatpush1.msra.mxu0 0.0
    %118 = vmatprep.subr.mxu0 0.0
    %119 = vmatpush1.msra.mxu0 0.0
    %120 = vmatprep.subr.mxu0 0.0
    %121 = vmatpush1.msra.mxu0 0.0
    %122 = vmatprep.subr.mxu0 0.0
    %123 = vmatpush1.msra.mxu0 0.0
    %124 = vmatprep.subr.mxu0 0.0
    %125 = vmatpush1.msra.mxu0 0.0
    %126 = vmatprep.subr.mxu0 0.0
    %127 = vmatpush1.msra.mxu0 0.0
    %128 = vmatprep.subr.mxu0 0.0
    %129 = vmatpush1.msra.mxu0 0.0
    %130 = vmatprep.subr.mxu0 0.0
    %131 = vmatpush1.msra.mxu0 0.0
    %132 = vmatprep.subr.mxu0 0.0
    %133 = vmatpush1.msra.mxu0 0.0
    %134 = vmatprep.subr.mxu0 0.0
    %135 = vmatpush1.msra.mxu0 0.0
    %136 = vmatprep.subr.mxu0 0.0
    %137 = vmatpush1.msra.mxu0 0.0
    %138 = vmatprep.mubr.f32.mxu0 0.0
    %139 = vmatmul.mubr.f32.gmra.mrb[0].mxu0 %v65
    %v140 = vpop.f32.mrb[0].mxu0
    %v141 = vadd.f32 %v62, %v140
    %v142 = vpop.f32.mrb[0].mxu0
    %143 = vmatprep.mubr.f32.mxu0 0.0
    %144 = vmatmul.mubr.f32.gmra.mrb[0].mxu0 %v68
    %v145 = vpop.f32.mrb[0].mxu0
    %v146 = vadd.f32 %v62, %v145
    %v147 = vpop.f32.mrb[0].mxu0
    %148 = vdwg.mxu0
    %v149 = vsub.f32 %v141, %v146
    %151 = vrot.lane.b32.xlu0 %v149, 96
    %v152 = vpop.permute.xlu0 %151
    %v154 = vmul.f32 %v141, %v152
    %v155 = vmul.f32 %v146, %v152
    %157 = vrot.lane.b32.xlu0 %v155, 32
    %v158 = vpop.permute.xlu0 %157
    %vm160 = vcmask 261120
    %v161 = vsel %vm160, %v154, %v158
    %v162 = vpack.c.bf16 %v161, %v161
    %v171 = vunpack.c.l.b16 %v47
    %v172 = vunpack.c.l.b16 %v48
    %v173 = vunpack.c.l.b16 %v49
    %v174 = vunpack.c.l.b16 %v50
    %v175 = vunpack.c.l.b16 %v51
    %v176 = vunpack.c.l.b16 %v52
    %v177 = vunpack.c.l.b16 %v53
    %v178 = vunpack.c.l.b16 %v54
    %v179 = vpack.c.b16 %v172, %v171
    %v180 = vpack.c.b16 %v174, %v173
    %v181 = vpack.c.b16 %v176, %v175
    %v182 = vpack.c.b16 %v178, %v177
    %vm187 = vcmask 523264
    %v189 = vsel %vm187, %v162, 0
    %191 = vmatprep.subr.bf16.mxu0 0
    %192 = vmatpush1.bf16.msra.mxu0 %v179
    %193 = vmatprep.subr.bf16.mxu0 0
    %194 = vmatpush1.bf16.msra.mxu0 %v180
    %195 = vmatprep.subr.bf16.mxu0 0
    %196 = vmatpush1.bf16.msra.mxu0 %v181
    %197 = vmatprep.subr.bf16.mxu0 0
    %198 = vmatpush1.bf16.msra.mxu0 %v182
    %199 = vmatprep.subr.bf16.mxu0 0
    %200 = vmatpush1.bf16.msra.mxu0 0
    %201 = vmatprep.subr.bf16.mxu0 0
    %202 = vmatpush1.bf16.msra.mxu0 0
    %203 = vmatprep.subr.bf16.mxu0 0
    %204 = vmatpush1.bf16.msra.mxu0 0
    %205 = vmatprep.subr.bf16.mxu0 0
    %206 = vmatpush1.bf16.msra.mxu0 0
    %207 = vmatprep.subr.bf16.mxu0 0
    %208 = vmatpush1.bf16.msra.mxu0 0
    %209 = vmatprep.subr.bf16.mxu0 0
    %210 = vmatpush1.bf16.msra.mxu0 0
    %211 = vmatprep.subr.bf16.mxu0 0
    %212 = vmatpush1.bf16.msra.mxu0 0
    %213 = vmatprep.subr.bf16.mxu0 0
    %214 = vmatpush1.bf16.msra.mxu0 0
    %215 = vmatprep.subr.bf16.mxu0 0
    %216 = vmatpush1.bf16.msra.mxu0 0
    %217 = vmatprep.subr.bf16.mxu0 0
    %218 = vmatpush1.bf16.msra.mxu0 0
    %219 = vmatprep.subr.bf16.mxu0 0
    %220 = vmatpush1.bf16.msra.mxu0 0
    %221 = vmatprep.subr.bf16.mxu0 0
    %222 = vmatpush1.bf16.msra.mxu0 0
    %223 = vmatprep.mubr.bf16.mxu0 0
    %224 = vmatmul.mubr.bf16.gmra.mrb[0].mxu0 %v189
    %v225 = vpop.f32.mrb[0].mxu0
    %v226 = vadd.f32 0.0, %v225
    %v227 = vpop.f32.mrb[0].mxu0
    %v228 = vpop.f32.mrb[0].mxu0
    %v229 = vpop.f32.mrb[0].mxu0
    %230 = vdwg.mxu0
    %v231 = vxor.u32 %v226, 2147483648
    %v232 = vmul.f32 %v231, 1.442695
    %v233 = vpow.pop %v232
    %v234 = vadd.f32 %v233, 1.0
    %v235 = vrcp.pop %v234
    %v236 = vmul.f32 1.0, %v235
    %237 = vrot.lane.b32.xlu0 %v149, 64
    %v238 = vpop.permute.xlu0 %237
    %v240 = vmul.f32 %v236, %v238
    %242 = vrot.lane.b32.xlu0 %v240, 64
    %v243 = vpop.permute.xlu0 %242
    %v245 = vadd.f32 %v146, %v243
    %v246 = vmul.f32 %v236, %v152
    %248 = vrot.lane.b32.xlu0 %v246, 32
    %v249 = vpop.permute.xlu0 %248
    %v251 = vadd.f32 %v146, %v249
    %v252 = vpack.c.bf16 %v251, %v245
    %v255 = vunpack.c.l.b16 %v55
    %v256 = vunpack.c.l.b16 %v56
    %v257 = vpack.c.b16 %v256, %v255
    %259 = vrot.lane.b32.xlu0 %v252, 64
    %v260 = vpop.permute.xlu0 %259
    %vm262 = vcmask 130048
    %v264 = vsel %vm262, %v257, 0
    %266 = vmatprep.subr.bf16.mxu0 0
    %267 = vmatpush1.bf16.msra.mxu0 %v260
    %268 = vmatprep.subr.bf16.mxu0 0
    %269 = vmatpush1.bf16.msra.mxu0 0
    %270 = vmatprep.subr.bf16.mxu0 0
    %271 = vmatpush1.bf16.msra.mxu0 0
    %272 = vmatprep.subr.bf16.mxu0 0
    %273 = vmatpush1.bf16.msra.mxu0 0
    %274 = vmatprep.subr.bf16.mxu0 0
    %275 = vmatpush1.bf16.msra.mxu0 0
    %276 = vmatprep.subr.bf16.mxu0 0
    %277 = vmatpush1.bf16.msra.mxu0 0
    %278 = vmatprep.subr.bf16.mxu0 0
    %279 = vmatpush1.bf16.msra.mxu0 0
    %280 = vmatprep.subr.bf16.mxu0 0
    %281 = vmatpush1.bf16.msra.mxu0 0
    %282 = vmatprep.subr.bf16.mxu0 0
    %283 = vmatpush1.bf16.msra.mxu0 0
    %284 = vmatprep.subr.bf16.mxu0 0
    %285 = vmatpush1.bf16.msra.mxu0 0
    %286 = vmatprep.subr.bf16.mxu0 0
    %287 = vmatpush1.bf16.msra.mxu0 0
    %288 = vmatprep.subr.bf16.mxu0 0
    %289 = vmatpush1.bf16.msra.mxu0 0
    %290 = vmatprep.subr.bf16.mxu0 0
    %291 = vmatpush1.bf16.msra.mxu0 0
    %292 = vmatprep.subr.bf16.mxu0 0
    %293 = vmatpush1.bf16.msra.mxu0 0
    %294 = vmatprep.subr.bf16.mxu0 0
    %295 = vmatpush1.bf16.msra.mxu0 0
    %296 = vmatprep.subr.bf16.mxu0 0
    %297 = vmatpush1.bf16.msra.mxu0 0
    %298 = vmatprep.mubr.bf16.mxu0 0
    %299 = vmatmul.mubr.bf16.gmra.mrb[0].mxu0 %v264
    %v300 = vpop.f32.mrb[0].mxu0
    %v301 = vadd.f32 0.0, %v300
    %v302 = vpop.f32.mrb[0].mxu0
    %v303 = vpop.f32.mrb[0].mxu0
    %v304 = vadd.f32 0.0, %v303
    %v305 = vpop.f32.mrb[0].mxu0
    %306 = vdwg.mxu0
    %v307 = vpack.c.bf16 %v304, %v301
    %v308 = vlaneseq
    %v309 = vshrl.u32 %v308, 7
    %v310 = vsub.s32 0, %v309
    %v311 = vrot.slane %v32, %v310
    %v316 = vunpack.c.l.b16 %v35
    %v317 = vunpack.c.l.b16 %v36
    %v318 = vunpack.c.l.b16 %v37
    %v319 = vunpack.c.l.b16 %v38
    %v320 = vpack.c.b16 %v317, %v316
    %v321 = vpack.c.b16 %v319, %v318
    %v325 = vsel %vm160, %v307, 0
    %327 = vmatprep.subr.bf16.mxu0 0
    %328 = vmatpush1.bf16.msra.mxu0 %v320
    %329 = vmatprep.subr.bf16.mxu0 0
    %330 = vmatpush1.bf16.msra.mxu0 %v321
    %331 = vmatprep.subr.bf16.mxu0 0
    %332 = vmatpush1.bf16.msra.mxu0 0
    %333 = vmatprep.subr.bf16.mxu0 0
    %334 = vmatpush1.bf16.msra.mxu0 0
    %335 = vmatprep.subr.bf16.mxu0 0
    %336 = vmatpush1.bf16.msra.mxu0 0
    %337 = vmatprep.subr.bf16.mxu0 0
    %338 = vmatpush1.bf16.msra.mxu0 0
    %339 = vmatprep.subr.bf16.mxu0 0
    %340 = vmatpush1.bf16.msra.mxu0 0
    %341 = vmatprep.subr.bf16.mxu0 0
    %342 = vmatpush1.bf16.msra.mxu0 0
    %343 = vmatprep.subr.bf16.mxu0 0
    %344 = vmatpush1.bf16.msra.mxu0 0
    %345 = vmatprep.subr.bf16.mxu0 0
    %346 = vmatpush1.bf16.msra.mxu0 0
    %347 = vmatprep.subr.bf16.mxu0 0
    %348 = vmatpush1.bf16.msra.mxu0 0
    %349 = vmatprep.subr.bf16.mxu0 0
    %350 = vmatpush1.bf16.msra.mxu0 0
    %351 = vmatprep.subr.bf16.mxu0 0
    %352 = vmatpush1.bf16.msra.mxu0 0
    %353 = vmatprep.subr.bf16.mxu0 0
    %354 = vmatpush1.bf16.msra.mxu0 0
    %355 = vmatprep.subr.bf16.mxu0 0
    %356 = vmatpush1.bf16.msra.mxu0 0
    %357 = vmatprep.subr.bf16.mxu0 0
    %358 = vmatpush1.bf16.msra.mxu0 0
    %359 = vmatprep.mubr.bf16.mxu0 0
    %360 = vmatmul.mubr.bf16.gmra.mrb[0].mxu0 %v325
    %v361 = vpop.f32.mrb[0].mxu0
    %v362 = vadd.f32 %v311, %v361
    %v363 = vpop.f32.mrb[0].mxu0
    %v364 = vpop.f32.mrb[0].mxu0
    %v365 = vadd.f32 %v311, %v364
    %v366 = vpop.f32.mrb[0].mxu0
    %367 = vdwg.mxu0
    %v372 = vunpack.c.l.b16 %v39
    %v373 = vunpack.c.l.b16 %v40
    %v374 = vunpack.c.l.b16 %v41
    %v375 = vunpack.c.l.b16 %v42
    %v376 = vpack.c.b16 %v373, %v372
    %v377 = vpack.c.b16 %v375, %v374
    %v381 = vsel %vm160, 0, 0
    %383 = vmatprep.subr.bf16.mxu0 0
    %384 = vmatpush1.bf16.msra.mxu0 %v376
    %385 = vmatprep.subr.bf16.mxu0 0
    %386 = vmatpush1.bf16.msra.mxu0 %v377
    %387 = vmatprep.subr.bf16.mxu0 0
    %388 = vmatpush1.bf16.msra.mxu0 0
    %389 = vmatprep.subr.bf16.mxu0 0
    %390 = vmatpush1.bf16.msra.mxu0 0
    %391 = vmatprep.subr.bf16.mxu0 0
    %392 = vmatpush1.bf16.msra.mxu0 0
    %393 = vmatprep.subr.bf16.mxu0 0
    %394 = vmatpush1.bf16.msra.mxu0 0
    %395 = vmatprep.subr.bf16.mxu0 0
    %396 = vmatpush1.bf16.msra.mxu0 0
    %397 = vmatprep.subr.bf16.mxu0 0
    %398 = vmatpush1.bf16.msra.mxu0 0
    %399 = vmatprep.subr.bf16.mxu0 0
    %400 = vmatpush1.bf16.msra.mxu0 0
    %401 = vmatprep.subr.bf16.mxu0 0
    %402 = vmatpush1.bf16.msra.mxu0 0
    %403 = vmatprep.subr.bf16.mxu0 0
    %404 = vmatpush1.bf16.msra.mxu0 0
    %405 = vmatprep.subr.bf16.mxu0 0
    %406 = vmatpush1.bf16.msra.mxu0 0
    %407 = vmatprep.subr.bf16.mxu0 0
    %408 = vmatpush1.bf16.msra.mxu0 0
    %409 = vmatprep.subr.bf16.mxu0 0
    %410 = vmatpush1.bf16.msra.mxu0 0
    %411 = vmatprep.subr.bf16.mxu0 0
    %412 = vmatpush1.bf16.msra.mxu0 0
    %413 = vmatprep.subr.bf16.mxu0 0
    %414 = vmatpush1.bf16.msra.mxu0 0
    %415 = vmatprep.mubr.bf16.mxu0 0
    %416 = vmatmul.mubr.bf16.gmra.mrb[0].mxu0 %v381
    %v417 = vpop.f32.mrb[0].mxu0
    %v418 = vadd.f32 0.0, %v417
    %v419 = vpop.f32.mrb[0].mxu0
    %v420 = vpop.f32.mrb[0].mxu0
    %v421 = vpop.f32.mrb[0].mxu0
    %422 = vdwg.mxu0
    %v423 = vadd.f32 %v362, %v418
    %v424 = vxor.u32 %v423, 2147483648
    %v425 = vmul.f32 %v424, 1.442695
    %v426 = vpow.pop %v425
    %v427 = vadd.f32 %v426, 1.0
    %v428 = vrcp.pop %v427
    %v429 = vmul.f32 1.0, %v428
    %v430 = vtanh.pop %v423
    %v431 = vmul.f32 %v429, 0.0
    %433 = vrot.lane.b32.xlu0 %v430, 64
    %v434 = vpop.permute.xlu0 %433
    %v436 = vmul.f32 %v429, %v434
    %438 = vrot.lane.b32.xlu0 %v436, 32
    %v439 = vpop.permute.xlu0 %438
    %v441 = vadd.f32 %v431, %v439
    %v442 = vtanh.pop %v441
    %444 = vrot.lane.b32.xlu0 %v442, 64
    %v445 = vpop.permute.xlu0 %444
    %v447 = vmul.f32 %v429, %v445
    %v448 = vpack.c.bf16 %v447, %v447
    %450 = vrot.lane.b32.xlu0 %v448, 32
    %v451 = vpop.permute.xlu0 %450
    %v453 = vsel %vm160, %v451, 0
    %455 = vmatprep.subr.bf16.mxu0 0
    %456 = vmatpush1.bf16.msra.mxu0 %v376
    %457 = vmatprep.subr.bf16.mxu0 0
    %458 = vmatpush1.bf16.msra.mxu0 %v377
    %459 = vmatprep.subr.bf16.mxu0 0
    %460 = vmatpush1.bf16.msra.mxu0 0
    %461 = vmatprep.subr.bf16.mxu0 0
    %462 = vmatpush1.bf16.msra.mxu0 0
    %463 = vmatprep.subr.bf16.mxu0 0
    %464 = vmatpush1.bf16.msra.mxu0 0
    %465 = vmatprep.subr.bf16.mxu0 0
    %466 = vmatpush1.bf16.msra.mxu0 0
    %467 = vmatprep.subr.bf16.mxu0 0
    %468 = vmatpush1.bf16.msra.mxu0 0
    %469 = vmatprep.subr.bf16.mxu0 0
    %470 = vmatpush1.bf16.msra.mxu0 0
    %471 = vmatprep.subr.bf16.mxu0 0
    %472 = vmatpush1.bf16.msra.mxu0 0
    %473 = vmatprep.subr.bf16.mxu0 0
    %474 = vmatpush1.bf16.msra.mxu0 0
    %475 = vmatprep.subr.bf16.mxu0 0
    %476 = vmatpush1.bf16.msra.mxu0 0
    %477 = vmatprep.subr.bf16.mxu0 0
    %478 = vmatpush1.bf16.msra.mxu0 0
    %479 = vmatprep.subr.bf16.mxu0 0
    %480 = vmatpush1.bf16.msra.mxu0 0
    %481 = vmatprep.subr.bf16.mxu0 0
    %482 = vmatpush1.bf16.msra.mxu0 0
    %483 = vmatprep.subr.bf16.mxu0 0
    %484 = vmatpush1.bf16.msra.mxu0 0
    %485 = vmatprep.subr.bf16.mxu0 0
    %486 = vmatpush1.bf16.msra.mxu0 0
    %487 = vmatprep.mubr.bf16.mxu0 0
    %488 = vmatmul.mubr.bf16.gmra.mrb[0].mxu0 %v453
    %v489 = vpop.f32.mrb[0].mxu0
    %v490 = vadd.f32 0.0, %v489
    %v491 = vpop.f32.mrb[0].mxu0
    %v492 = vpop.f32.mrb[0].mxu0
    %v493 = vpop.f32.mrb[0].mxu0
    %494 = vdwg.mxu0
    %v496 = vrot.slane %v490, 6
    %v498 = vadd.f32 %v362, %v496
    %v499 = vxor.u32 %v498, 2147483648
    %v500 = vmul.f32 %v499, 1.442695
    %v501 = vpow.pop %v500
    %v502 = vadd.f32 %v501, 1.0
    %v503 = vrcp.pop %v502
    %v504 = vmul.f32 1.0, %v503
    %v505 = vtanh.pop %v498
    %v507 = vrot.slane %v441, 6
    %v509 = vmul.f32 %v504, %v507
    %511 = vrot.lane.b32.xlu0 %v505, 64
    %v512 = vpop.permute.xlu0 %511
    %v514 = vmul.f32 %v504, %v512
    %516 = vrot.lane.b32.xlu0 %v514, 32
    %v517 = vpop.permute.xlu0 %516
    %v519 = vadd.f32 %v509, %v517
    %v520 = vtanh.pop %v519
    %522 = vrot.lane.b32.xlu0 %v520, 64
    %v523 = vpop.permute.xlu0 %522
    %v525 = vmul.f32 %v504, %v523
    %v526 = vpack.c.bf16 %v525, %v525
    %v528 = vrot.slane %v526, 1
    %529 = vrot.lane.b32.xlu0 %v528, 32
    %v530 = vpop.permute.xlu0 %529
    %v532 = vsel %vm160, %v530, 0
    %534 = vmatprep.subr.bf16.mxu0 0
    %535 = vmatpush1.bf16.msra.mxu0 %v376
    %536 = vmatprep.subr.bf16.mxu0 0
    %537 = vmatpush1.bf16.msra.mxu0 %v377
    %538 = vmatprep.subr.bf16.mxu0 0
    %539 = vmatpush1.bf16.msra.mxu0 0
    %540 = vmatprep.subr.bf16.mxu0 0
    %541 = vmatpush1.bf16.msra.mxu0 0
    %542 = vmatprep.subr.bf16.mxu0 0
    %543 = vmatpush1.bf16.msra.mxu0 0
    %544 = vmatprep.subr.bf16.mxu0 0
    %545 = vmatpush1.bf16.msra.mxu0 0
    %546 = vmatprep.subr.bf16.mxu0 0
    %547 = vmatpush1.bf16.msra.mxu0 0
    %548 = vmatprep.subr.bf16.mxu0 0
    %549 = vmatpush1.bf16.msra.mxu0 0
    %550 = vmatprep.subr.bf16.mxu0 0
    %551 = vmatpush1.bf16.msra.mxu0 0
    %552 = vmatprep.subr.bf16.mxu0 0
    %553 = vmatpush1.bf16.msra.mxu0 0
    %554 = vmatprep.subr.bf16.mxu0 0
    %555 = vmatpush1.bf16.msra.mxu0 0
    %556 = vmatprep.subr.bf16.mxu0 0
    %557 = vmatpush1.bf16.msra.mxu0 0
    %558 = vmatprep.subr.bf16.mxu0 0
    %559 = vmatpush1.bf16.msra.mxu0 0
    %560 = vmatprep.subr.bf16.mxu0 0
    %561 = vmatpush1.bf16.msra.mxu0 0
    %562 = vmatprep.subr.bf16.mxu0 0
    %563 = vmatpush1.bf16.msra.mxu0 0
    %564 = vmatprep.subr.bf16.mxu0 0
    %565 = vmatpush1.bf16.msra.mxu0 0
    %566 = vmatprep.mubr.bf16.mxu0 0
    %567 = vmatmul.mubr.bf16.gmra.mrb[0].mxu0 %v532
    %v568 = vpop.f32.mrb[0].mxu0
    %v569 = vadd.f32 0.0, %v568
    %v570 = vpop.f32.mrb[0].mxu0
    %v571 = vpop.f32.mrb[0].mxu0
    %v572 = vpop.f32.mrb[0].mxu0
    %573 = vdwg.mxu0
    %v575 = vrot.slane %v569, 4
    %v577 = vadd.f32 %v362, %v575
    %v578 = vxor.u32 %v577, 2147483648
    %v579 = vmul.f32 %v578, 1.442695
    %v580 = vpow.pop %v579
    %v581 = vadd.f32 %v580, 1.0
    %v582 = vrcp.pop %v581
    %v583 = vmul.f32 1.0, %v582
    %v584 = vtanh.pop %v577
    %v586 = vrot.slane %v519, 6
    %v588 = vmul.f32 %v583, %v586
    %590 = vrot.lane.b32.xlu0 %v584, 64
    %v591 = vpop.permute.xlu0 %590
    %v593 = vmul.f32 %v583, %v591
    %595 = vrot.lane.b32.xlu0 %v593, 32
    %v596 = vpop.permute.xlu0 %595
    %v598 = vadd.f32 %v588, %v596
    %v599 = vtanh.pop %v598
    %601 = vrot.lane.b32.xlu0 %v599, 64
    %v602 = vpop.permute.xlu0 %601
    %v604 = vmul.f32 %v583, %v602
    %v605 = vpack.c.bf16 %v604, %v604
    %v607 = vrot.slane %v605, 2
    %608 = vrot.lane.b32.xlu0 %v607, 32
    %v609 = vpop.permute.xlu0 %608
    %v611 = vsel %vm160, %v609, 0
    %613 = vmatprep.subr.bf16.mxu0 0
    %614 = vmatpush1.bf16.msra.mxu0 %v376
    %615 = vmatprep.subr.bf16.mxu0 0
    %616 = vmatpush1.bf16.msra.mxu0 %v377
    %617 = vmatprep.subr.bf16.mxu0 0
    %618 = vmatpush1.bf16.msra.mxu0 0
    %619 = vmatprep.subr.bf16.mxu0 0
    %620 = vmatpush1.bf16.msra.mxu0 0
    %621 = vmatprep.subr.bf16.mxu0 0
    %622 = vmatpush1.bf16.msra.mxu0 0
    %623 = vmatprep.subr.bf16.mxu0 0
    %624 = vmatpush1.bf16.msra.mxu0 0
    %625 = vmatprep.subr.bf16.mxu0 0
    %626 = vmatpush1.bf16.msra.mxu0 0
    %627 = vmatprep.subr.bf16.mxu0 0
    %628 = vmatpush1.bf16.msra.mxu0 0
    %629 = vmatprep.subr.bf16.mxu0 0
    %630 = vmatpush1.bf16.msra.mxu0 0
    %631 = vmatprep.subr.bf16.mxu0 0
    %632 = vmatpush1.bf16.msra.mxu0 0
    %633 = vmatprep.subr.bf16.mxu0 0
    %634 = vmatpush1.bf16.msra.mxu0 0
    %635 = vmatprep.subr.bf16.mxu0 0
    %636 = vmatpush1.bf16.msra.mxu0 0
    %637 = vmatprep.subr.bf16.mxu0 0
    %638 = vmatpush1.bf16.msra.mxu0 0
    %639 = vmatprep.subr.bf16.mxu0 0
    %640 = vmatpush1.bf16.msra.mxu0 0
    %641 = vmatprep.subr.bf16.mxu0 0
    %642 = vmatpush1.bf16.msra.mxu0 0
    %643 = vmatprep.subr.bf16.mxu0 0
    %644 = vmatpush1.bf16.msra.mxu0 0
    %645 = vmatprep.mubr.bf16.mxu0 0
    %646 = vmatmul.mubr.bf16.gmra.mrb[0].mxu0 %v611
    %v647 = vpop.f32.mrb[0].mxu0
    %v648 = vadd.f32 0.0, %v647
    %v649 = vpop.f32.mrb[0].mxu0
    %v650 = vpop.f32.mrb[0].mxu0
    %v651 = vpop.f32.mrb[0].mxu0
    %652 = vdwg.mxu0
    %v654 = vrot.slane %v648, 2
    %v656 = vadd.f32 %v362, %v654
    %v657 = vxor.u32 %v656, 2147483648
    %v658 = vmul.f32 %v657, 1.442695
    %v659 = vpow.pop %v658
    %v660 = vadd.f32 %v659, 1.0
    %v661 = vrcp.pop %v660
    %v662 = vmul.f32 1.0, %v661
    %v663 = vtanh.pop %v656
    %v665 = vrot.slane %v598, 6
    %v667 = vmul.f32 %v662, %v665
    %669 = vrot.lane.b32.xlu0 %v663, 64
    %v670 = vpop.permute.xlu0 %669
    %v672 = vmul.f32 %v662, %v670
    %674 = vrot.lane.b32.xlu0 %v672, 32
    %v675 = vpop.permute.xlu0 %674
    %v677 = vadd.f32 %v667, %v675
    %v678 = vtanh.pop %v677
    %680 = vrot.lane.b32.xlu0 %v678, 64
    %v681 = vpop.permute.xlu0 %680
    %v683 = vmul.f32 %v662, %v681
    %v684 = vpack.c.bf16 %v683, %v683
    %v686 = vrot.slane %v684, 3
    %687 = vrot.lane.b32.xlu0 %v686, 32
    %v688 = vpop.permute.xlu0 %687
    %v690 = vsel %vm160, %v688, 0
    %692 = vmatprep.subr.bf16.mxu0 0
    %693 = vmatpush1.bf16.msra.mxu0 %v376
    %694 = vmatprep.subr.bf16.mxu0 0
    %695 = vmatpush1.bf16.msra.mxu0 %v377
    %696 = vmatprep.subr.bf16.mxu0 0
    %697 = vmatpush1.bf16.msra.mxu0 0
    %698 = vmatprep.subr.bf16.mxu0 0
    %699 = vmatpush1.bf16.msra.mxu0 0
    %700 = vmatprep.subr.bf16.mxu0 0
    %701 = vmatpush1.bf16.msra.mxu0 0
    %702 = vmatprep.subr.bf16.mxu0 0
    %703 = vmatpush1.bf16.msra.mxu0 0
    %704 = vmatprep.subr.bf16.mxu0 0
    %705 = vmatpush1.bf16.msra.mxu0 0
    %706 = vmatprep.subr.bf16.mxu0 0
    %707 = vmatpush1.bf16.msra.mxu0 0
    %708 = vmatprep.subr.bf16.mxu0 0
    %709 = vmatpush1.bf16.msra.mxu0 0
    %710 = vmatprep.subr.bf16.mxu0 0
    %711 = vmatpush1.bf16.msra.mxu0 0
    %712 = vmatprep.subr.bf16.mxu0 0
    %713 = vmatpush1.bf16.msra.mxu0 0
    %714 = vmatprep.subr.bf16.mxu0 0
    %715 = vmatpush1.bf16.msra.mxu0 0
    %716 = vmatprep.subr.bf16.mxu0 0
    %717 = vmatpush1.bf16.msra.mxu0 0
    %718 = vmatprep.subr.bf16.mxu0 0
    %719 = vmatpush1.bf16.msra.mxu0 0
    %720 = vmatprep.subr.bf16.mxu0 0
    %721 = vmatpush1.bf16.msra.mxu0 0
    %722 = vmatprep.subr.bf16.mxu0 0
    %723 = vmatpush1.bf16.msra.mxu0 0
    %724 = vmatprep.mubr.bf16.mxu0 0
    %725 = vmatmul.mubr.bf16.gmra.mrb[0].mxu0 %v690
    %v726 = vpop.f32.mrb[0].mxu0
    %v727 = vadd.f32 0.0, %v726
    %v728 = vpop.f32.mrb[0].mxu0
    %v729 = vpop.f32.mrb[0].mxu0
    %v730 = vpop.f32.mrb[0].mxu0
    %731 = vdwg.mxu0
    %v732 = vadd.f32 %v365, %v727
    %v733 = vxor.u32 %v732, 2147483648
    %v734 = vmul.f32 %v733, 1.442695
    %v735 = vpow.pop %v734
    %v736 = vadd.f32 %v735, 1.0
    %v737 = vrcp.pop %v736
    %v738 = vmul.f32 1.0, %v737
    %v739 = vtanh.pop %v732
    %v741 = vrot.slane %v677, 6
    %v743 = vmul.f32 %v738, %v741
    %745 = vrot.lane.b32.xlu0 %v739, 64
    %v746 = vpop.permute.xlu0 %745
    %v748 = vmul.f32 %v738, %v746
    %750 = vrot.lane.b32.xlu0 %v748, 32
    %v751 = vpop.permute.xlu0 %750
    %v753 = vadd.f32 %v743, %v751
    %v754 = vtanh.pop %v753
    %756 = vrot.lane.b32.xlu0 %v754, 64
    %v757 = vpop.permute.xlu0 %756
    %v759 = vmul.f32 %v738, %v757
    %v760 = vpack.c.bf16 %v759, %v759
    %762 = vrot.lane.b32.xlu0 %v760, 32
    %v763 = vpop.permute.xlu0 %762
    %v765 = vsel %vm160, %v763, 0
    %767 = vmatprep.subr.bf16.mxu0 0
    %768 = vmatpush1.bf16.msra.mxu0 %v376
    %769 = vmatprep.subr.bf16.mxu0 0
    %770 = vmatpush1.bf16.msra.mxu0 %v377
    %771 = vmatprep.subr.bf16.mxu0 0
    %772 = vmatpush1.bf16.msra.mxu0 0
    %773 = vmatprep.subr.bf16.mxu0 0
    %774 = vmatpush1.bf16.msra.mxu0 0
    %775 = vmatprep.subr.bf16.mxu0 0
    %776 = vmatpush1.bf16.msra.mxu0 0
    %777 = vmatprep.subr.bf16.mxu0 0
    %778 = vmatpush1.bf16.msra.mxu0 0
    %779 = vmatprep.subr.bf16.mxu0 0
    %780 = vmatpush1.bf16.msra.mxu0 0
    %781 = vmatprep.subr.bf16.mxu0 0
    %782 = vmatpush1.bf16.msra.mxu0 0
    %783 = vmatprep.subr.bf16.mxu0 0
    %784 = vmatpush1.bf16.msra.mxu0 0
    %785 = vmatprep.subr.bf16.mxu0 0
    %786 = vmatpush1.bf16.msra.mxu0 0
    %787 = vmatprep.subr.bf16.mxu0 0
    %788 = vmatpush1.bf16.msra.mxu0 0
    %789 = vmatprep.subr.bf16.mxu0 0
    %790 = vmatpush1.bf16.msra.mxu0 0
    %791 = vmatprep.subr.bf16.mxu0 0
    %792 = vmatpush1.bf16.msra.mxu0 0
    %793 = vmatprep.subr.bf16.mxu0 0
    %794 = vmatpush1.bf16.msra.mxu0 0
    %795 = vmatprep.subr.bf16.mxu0 0
    %796 = vmatpush1.bf16.msra.mxu0 0
    %797 = vmatprep.subr.bf16.mxu0 0
    %798 = vmatpush1.bf16.msra.mxu0 0
    %799 = vmatprep.mubr.bf16.mxu0 0
    %800 = vmatmul.mubr.bf16.gmra.mrb[0].mxu0 %v765
    %v801 = vpop.f32.mrb[0].mxu0
    %v802 = vadd.f32 0.0, %v801
    %v803 = vpop.f32.mrb[0].mxu0
    %v804 = vpop.f32.mrb[0].mxu0
    %v805 = vpop.f32.mrb[0].mxu0
    %806 = vdwg.mxu0
    %v808 = vrot.slane %v802, 6
    %v810 = vadd.f32 %v365, %v808
    %v811 = vxor.u32 %v810, 2147483648
    %v812 = vmul.f32 %v811, 1.442695
    %v813 = vpow.pop %v812
    %v814 = vadd.f32 %v813, 1.0
    %v815 = vrcp.pop %v814
    %v816 = vmul.f32 1.0, %v815
    %v817 = vtanh.pop %v810
    %v819 = vrot.slane %v753, 6
    %v821 = vmul.f32 %v816, %v819
    %823 = vrot.lane.b32.xlu0 %v817, 64
    %v824 = vpop.permute.xlu0 %823
    %v826 = vmul.f32 %v816, %v824
    %828 = vrot.lane.b32.xlu0 %v826, 32
    %v829 = vpop.permute.xlu0 %828
    %v831 = vadd.f32 %v821, %v829
    %v832 = vtanh.pop %v831
    %834 = vrot.lane.b32.xlu0 %v832, 64
    %v835 = vpop.permute.xlu0 %834
    %v837 = vmul.f32 %v816, %v835
    %v838 = vpack.c.bf16 %v837, %v837
    %v840 = vrot.slane %v838, 1
    %841 = vrot.lane.b32.xlu0 %v840, 32
    %v842 = vpop.permute.xlu0 %841
    %v844 = vsel %vm160, %v842, 0
    %846 = vmatprep.subr.bf16.mxu0 0
    %847 = vmatpush1.bf16.msra.mxu0 %v376
    %848 = vmatprep.subr.bf16.mxu0 0
    %849 = vmatpush1.bf16.msra.mxu0 %v377
    %850 = vmatprep.subr.bf16.mxu0 0
    %851 = vmatpush1.bf16.msra.mxu0 0
    %852 = vmatprep.subr.bf16.mxu0 0
    %853 = vmatpush1.bf16.msra.mxu0 0
    %854 = vmatprep.subr.bf16.mxu0 0
    %855 = vmatpush1.bf16.msra.mxu0 0
    %856 = vmatprep.subr.bf16.mxu0 0
    %857 = vmatpush1.bf16.msra.mxu0 0
    %858 = vmatprep.subr.bf16.mxu0 0
    %859 = vmatpush1.bf16.msra.mxu0 0
    %860 = vmatprep.subr.bf16.mxu0 0
    %861 = vmatpush1.bf16.msra.mxu0 0
    %862 = vmatprep.subr.bf16.mxu0 0
    %863 = vmatpush1.bf16.msra.mxu0 0
    %864 = vmatprep.subr.bf16.mxu0 0
    %865 = vmatpush1.bf16.msra.mxu0 0
    %866 = vmatprep.subr.bf16.mxu0 0
    %867 = vmatpush1.bf16.msra.mxu0 0
    %868 = vmatprep.subr.bf16.mxu0 0
    %869 = vmatpush1.bf16.msra.mxu0 0
    %870 = vmatprep.subr.bf16.mxu0 0
    %871 = vmatpush1.bf16.msra.mxu0 0
    %872 = vmatprep.subr.bf16.mxu0 0
    %873 = vmatpush1.bf16.msra.mxu0 0
    %874 = vmatprep.subr.bf16.mxu0 0
    %875 = vmatpush1.bf16.msra.mxu0 0
    %876 = vmatprep.subr.bf16.mxu0 0
    %877 = vmatpush1.bf16.msra.mxu0 0
    %878 = vmatprep.mubr.bf16.mxu0 0
    %879 = vmatmul.mubr.bf16.gmra.mrb[0].mxu0 %v844
    %v880 = vpop.f32.mrb[0].mxu0
    %v881 = vadd.f32 0.0, %v880
    %v882 = vpop.f32.mrb[0].mxu0
    %v883 = vpop.f32.mrb[0].mxu0
    %v884 = vpop.f32.mrb[0].mxu0
    %885 = vdwg.mxu0
    %v887 = vrot.slane %v881, 4
    %v889 = vadd.f32 %v365, %v887
    %v890 = vxor.u32 %v889, 2147483648
    %v891 = vmul.f32 %v890, 1.442695
    %v892 = vpow.pop %v891
    %v893 = vadd.f32 %v892, 1.0
    %v894 = vrcp.pop %v893
    %v895 = vmul.f32 1.0, %v894
    %v896 = vtanh.pop %v889
    %v898 = vrot.slane %v831, 6
    %v900 = vmul.f32 %v895, %v898
    %902 = vrot.lane.b32.xlu0 %v896, 64
    %v903 = vpop.permute.xlu0 %902
    %v905 = vmul.f32 %v895, %v903
    %907 = vrot.lane.b32.xlu0 %v905, 32
    %v908 = vpop.permute.xlu0 %907
    %v910 = vadd.f32 %v900, %v908
    %v911 = vtanh.pop %v910
    %913 = vrot.lane.b32.xlu0 %v911, 64
    %v914 = vpop.permute.xlu0 %913
    %v916 = vmul.f32 %v895, %v914
    %v917 = vpack.c.bf16 %v916, %v916
    %v919 = vrot.slane %v917, 2
    %920 = vrot.lane.b32.xlu0 %v919, 32
    %v921 = vpop.permute.xlu0 %920
    %v923 = vsel %vm160, %v921, 0
    %925 = vmatprep.subr.bf16.mxu0 0
    %926 = vmatpush1.bf16.msra.mxu0 %v376
    %927 = vmatprep.subr.bf16.mxu0 0
    %928 = vmatpush1.bf16.msra.mxu0 %v377
    %929 = vmatprep.subr.bf16.mxu0 0
    %930 = vmatpush1.bf16.msra.mxu0 0
    %931 = vmatprep.subr.bf16.mxu0 0
    %932 = vmatpush1.bf16.msra.mxu0 0
    %933 = vmatprep.subr.bf16.mxu0 0
    %934 = vmatpush1.bf16.msra.mxu0 0
    %935 = vmatprep.subr.bf16.mxu0 0
    %936 = vmatpush1.bf16.msra.mxu0 0
    %937 = vmatprep.subr.bf16.mxu0 0
    %938 = vmatpush1.bf16.msra.mxu0 0
    %939 = vmatprep.subr.bf16.mxu0 0
    %940 = vmatpush1.bf16.msra.mxu0 0
    %941 = vmatprep.subr.bf16.mxu0 0
    %942 = vmatpush1.bf16.msra.mxu0 0
    %943 = vmatprep.subr.bf16.mxu0 0
    %944 = vmatpush1.bf16.msra.mxu0 0
    %945 = vmatprep.subr.bf16.mxu0 0
    %946 = vmatpush1.bf16.msra.mxu0 0
    %947 = vmatprep.subr.bf16.mxu0 0
    %948 = vmatpush1.bf16.msra.mxu0 0
    %949 = vmatprep.subr.bf16.mxu0 0
    %950 = vmatpush1.bf16.msra.mxu0 0
    %951 = vmatprep.subr.bf16.mxu0 0
    %952 = vmatpush1.bf16.msra.mxu0 0
    %953 = vmatprep.subr.bf16.mxu0 0
    %954 = vmatpush1.bf16.msra.mxu0 0
    %955 = vmatprep.subr.bf16.mxu0 0
    %956 = vmatpush1.bf16.msra.mxu0 0
    %957 = vmatprep.mubr.bf16.mxu0 0
    %958 = vmatmul.mubr.bf16.gmra.mrb[0].mxu0 %v923
    %v959 = vpop.f32.mrb[0].mxu0
    %v960 = vadd.f32 0.0, %v959
    %v961 = vpop.f32.mrb[0].mxu0
    %v962 = vpop.f32.mrb[0].mxu0
    %v963 = vpop.f32.mrb[0].mxu0
    %964 = vdwg.mxu0
    %v966 = vrot.slane %v960, 2
    %v968 = vadd.f32 %v365, %v966
    %v969 = vxor.u32 %v968, 2147483648
    %v970 = vmul.f32 %v969, 1.442695
    %v971 = vpow.pop %v970
    %v972 = vadd.f32 %v971, 1.0
    %v973 = vrcp.pop %v972
    %v974 = vmul.f32 1.0, %v973
    %v975 = vtanh.pop %v968
    %v977 = vrot.slane %v910, 6
    %v979 = vmul.f32 %v974, %v977
    %981 = vrot.lane.b32.xlu0 %v975, 64
    %v982 = vpop.permute.xlu0 %981
    %v984 = vmul.f32 %v974, %v982
    %986 = vrot.lane.b32.xlu0 %v984, 32
    %v987 = vpop.permute.xlu0 %986
    %v989 = vadd.f32 %v979, %v987
    %v990 = vtanh.pop %v989
    %992 = vrot.lane.b32.xlu0 %v990, 64
    %v993 = vpop.permute.xlu0 %992
    %v995 = vmul.f32 %v974, %v993
    %v996 = vpack.c.bf16 %v995, %v995
    %v997 = vlaneseq
    %v998 = vshrl.u32 %v997, 7
    %v999 = vsub.s32 0, %v998
    %v1000 = vrot.slane %v34, %v999
    %v1002 = vrot.slane %v996, 3
    %1003 = vrot.lane.b32.xlu0 %v1002, 32
    %v1004 = vpop.permute.xlu0 %1003
    %v1009 = vunpack.c.l.b16 %v43
    %v1010 = vunpack.c.l.b16 %v44
    %v1011 = vunpack.c.l.b16 %v45
    %v1012 = vunpack.c.l.b16 %v46
    %v1013 = vpack.c.b16 %v1010, %v1009
    %v1014 = vpack.c.b16 %v1012, %v1011
    %v1018 = vsel %vm160, %v1004, 0
    %1020 = vmatprep.subr.bf16.mxu0 0
    %1021 = vmatpush1.bf16.msra.mxu0 %v1013
    %1022 = vmatprep.subr.bf16.mxu0 0
    %1023 = vmatpush1.bf16.msra.mxu0 %v1014
    %1024 = vmatprep.subr.bf16.mxu0 0
    %1025 = vmatpush1.bf16.msra.mxu0 0
    %1026 = vmatprep.subr.bf16.mxu0 0
    %1027 = vmatpush1.bf16.msra.mxu0 0
    %1028 = vmatprep.subr.bf16.mxu0 0
    %1029 = vmatpush1.bf16.msra.mxu0 0
    %1030 = vmatprep.subr.bf16.mxu0 0
    %1031 = vmatpush1.bf16.msra.mxu0 0
    %1032 = vmatprep.subr.bf16.mxu0 0
    %1033 = vmatpush1.bf16.msra.mxu0 0
    %1034 = vmatprep.subr.bf16.mxu0 0
    %1035 = vmatpush1.bf16.msra.mxu0 0
    %1036 = vmatprep.subr.bf16.mxu0 0
    %1037 = vmatpush1.bf16.msra.mxu0 0
    %1038 = vmatprep.subr.bf16.mxu0 0
    %1039 = vmatpush1.bf16.msra.mxu0 0
    %1040 = vmatprep.subr.bf16.mxu0 0
    %1041 = vmatpush1.bf16.msra.mxu0 0
    %1042 = vmatprep.subr.bf16.mxu0 0
    %1043 = vmatpush1.bf16.msra.mxu0 0
    %1044 = vmatprep.subr.bf16.mxu0 0
    %1045 = vmatpush1.bf16.msra.mxu0 0
    %1046 = vmatprep.subr.bf16.mxu0 0
    %1047 = vmatpush1.bf16.msra.mxu0 0
    %1048 = vmatprep.subr.bf16.mxu0 0
    %1049 = vmatpush1.bf16.msra.mxu0 0
    %1050 = vmatprep.subr.bf16.mxu0 0
    %1051 = vmatpush1.bf16.msra.mxu0 0
    %1052 = vmatprep.mubr.bf16.mxu0 0
    %1053 = vmatmul.mubr.bf16.gmra.mrb[0].mxu0 %v1018
    %v1054 = vpop.f32.mrb[0].mxu0
    %v1055 = vadd.f32 %v1000, %v1054
    %v1056 = vpop.f32.mrb[0].mxu0
    %v1057 = vpop.f32.mrb[0].mxu0
    %v1058 = vpop.f32.mrb[0].mxu0
    %1059 = vdwg.mxu0
    %v1060 = vtanh.pop %v1055
    %1061 = vst [vmem:[#allocation5] sm:$0x3] %v1060
    // Predicated region
    $region14: #{multihead_attention_forward.1} parent=1 // pred_check
      _
    $region15: #{multihead_attention_forward.1} parent=1 // pred_check_branch
      %1063 = sbr.rel (0) target = $region17
    $region16: #{multihead_attention_forward.1} parent=1 // pred_region
      %s1065 = ssub.s32 32, 32
      %1066 = vsyncadd [#allocation4], %s1065
      %s1068 = sshll.u32 [#allocation5], 4
      %s1069 = int_to_ptr.vmem [resolvable:$true] %s1068
      %1071 = dma.vmem_to_hbm [thread:$0]  %s1069, 32, %s2, [#allocation4]
    $region17: #{multihead_attention_forward.1} parent=1 // pred_fallthru
      _
    // Predicated region
    $region18: #{multihead_attention_forward.1} parent=1 // pred_check
      _
    $region19: #{multihead_attention_forward.1} parent=1 // pred_check_branch
      %1073 = sbr.rel (0) target = $region21
    $region20: #{multihead_attention_forward.1} parent=1 // pred_region
      %1074 = dma.done [#allocation4], 32
    $region21: #{multihead_attention_forward.1} parent=1 // pred_fallthru
      _
    %1075 = vsyncpa [#allocation3], 1
    %1076 = vsyncpa [#allocation4], 1

</llo_original>
